<compile_context>
chip_gen: v6e
topology: v6e:2x2x1
jax: 0.10.0
libtpu: 0.0.40
codegen_flags: <defaults>
</compile_context>

<pallas_src>
import jax
import jax.numpy as jnp
from jax.experimental import pallas as pl
from jax.experimental.pallas import tpu as pltpu

_NUM_ITEMS = 18
_BN_EPS = 1e-5
_OUT_PAD = 128            # lane-dense padded output width (>= 19, multiple of 128)


# ----------------------------------------------------------------------------
# Kernels
# ----------------------------------------------------------------------------

def _resident_kernel(x_ref, w1_ref, t1_ref, w2_ref, t2_ref, w3_ref, b3_ref,
                     out_ref):
    """Fast path: all weights VMEM-resident, no k axis, straight-line body."""
    # x arrives f32; cast to bf16 once per batch tile (MXU-native).
    x = x_ref[...].astype(jnp.bfloat16)

    # fc1 (bn1 scale pre-folded into w1 columns) + shift + relu.
    # Dropout is identity in eval mode.
    h = jnp.dot(x, w1_ref[...], preferred_element_type=jnp.float32)
    h = jnp.maximum(h + t1_ref[...], 0.0)

    # fc2 (bn2 scale pre-folded into w2 columns) + shift + relu.
    h2 = jnp.dot(h.astype(jnp.bfloat16), w2_ref[...],
                 preferred_element_type=jnp.float32)
    h2 = jnp.maximum(h2 + t2_ref[...], 0.0)

    # fc3 into a lane-dense 128-wide tile; columns >= 18 are exactly zero.
    items = jnp.dot(h2.astype(jnp.bfloat16), w3_ref[...],
                    preferred_element_type=jnp.float32) + b3_ref[...]

    # score_layer: Linear(18->1, bias=False) with frozen all-ones weight
    # == row sum (zero padding contributes nothing).  XLU, not MXU.
    score = jnp.sum(items, axis=-1, keepdims=True)
    lane = jax.lax.broadcasted_iota(jnp.int32, items.shape, 1)
    out_ref[...] = jnp.where(lane == _NUM_ITEMS, score, items)


def _streamed_kernel(x_ref, w1_ref, t1_ref, w2_ref, t2_ref, w3_ref, b3_ref,
                     out_ref, acc_ref):
    """Fallback for large in_channels: k-tiles over the 8C hidden dim."""
    k = pl.program_id(1)

    x = x_ref[...].astype(jnp.bfloat16)
    h = jnp.dot(x, w1_ref[...], preferred_element_type=jnp.float32)
    h = jnp.maximum(h + t1_ref[...], 0.0)
    part = jnp.dot(h.astype(jnp.bfloat16), w2_ref[...],
                   preferred_element_type=jnp.float32)

    @pl.when(k == 0)
    def _():
        acc_ref[...] = part            # direct store: no zero-init + add

    @pl.when(k > 0)
    def _():
        acc_ref[...] += part

    @pl.when(k == pl.num_programs(1) - 1)
    def _():
        h2 = jnp.maximum(acc_ref[...] + t2_ref[...], 0.0)
        items = jnp.dot(h2.astype(jnp.bfloat16), w3_ref[...],
                        preferred_element_type=jnp.float32) + b3_ref[...]
        score = jnp.sum(items, axis=-1, keepdims=True)
        lane = jax.lax.broadcasted_iota(jnp.int32, items.shape, 1)
        out_ref[...] = jnp.where(lane == _NUM_ITEMS, score, items)


# ----------------------------------------------------------------------------
# Tiling / VMEM planning
# ----------------------------------------------------------------------------

def _vmem_budget():
    """(planning budget, vmem_limit_bytes), derived per generation."""
    try:
        cap = int(pltpu.get_tpu_info().vmem_capacity_bytes)
    except Exception:
        cap = 64 * 1024 * 1024        # conservative (v7x per-TC physical)
    return int(cap * 0.70), int(cap * 0.85)


def _pick_bm(B):
    for c in (512, 256, 128):
        if B % c == 0:
            return c
    return B                          # small batch: block == full array dim


def _resident_vmem_bytes(bm, C, H1, H2):
    w = 2 * (C * H1 + H1 * H2 + H2 * _OUT_PAD) * 2        # bf16 weights, x2 buffers
    io = 2 * bm * C * 4 + 2 * bm * _OUT_PAD * 4           # f32 x in / f32 out
    act = bm * (2 * H1 + 2 * H2 + 2 * _OUT_PAD) * 4       # compiler temps (generous)
    vec = 4 * (H1 + H2 + _OUT_PAD) * 4                    # bias rows
    return w + io + act + vec


def _streamed_vmem_bytes(bm, tk, C, H1, H2):
    w = 2 * (C * tk + tk * H2 + H2 * _OUT_PAD) * 2
    io = 2 * bm * C * 4 + 2 * bm * _OUT_PAD * 4
    acc = bm * H2 * 4
    act = bm * (2 * tk + H2 + _OUT_PAD) * 4
    vec = 4 * (tk + H2 + _OUT_PAD) * 4
    return w + io + acc + act + vec


def _plan(B, C, H1, H2, budget):
    """Return (bm, tk); tk is None for the resident (no-k-axis) path."""
    bm = _pick_bm(B)
    if _resident_vmem_bytes(bm, C, H1, H2) <= budget:
        return bm, None
    # Streamed fallback: prefer 256-wide-or-larger MXU tiles on the k axis.
    for tk in (512, 256, 128):
        if H1 % tk == 0 and _streamed_vmem_bytes(bm, tk, C, H1, H2) <= budget:
            return bm, tk
    return bm, (128 if H1 % 128 == 0 else H1)   # last resort


# ----------------------------------------------------------------------------
# Parameter prep & forward
# ----------------------------------------------------------------------------

def prepare_params(params):
    """One-time parameter preparation (NOT per forward call): fold BN scales
    into the fc weights, fold fc biases into the BN shifts, cast to bf16, and
    pad fc3 to a lane-dense 128-wide output."""
    (w1, b1, bn1_g, bn1_b, bn1_m, bn1_v,
     w2, b2, bn2_g, bn2_b, bn2_m, bn2_v,
     w3, b3, sw) = params
    del sw  # frozen all-ones score weight -> score == sum(items), done in-kernel

    s1 = bn1_g / jnp.sqrt(bn1_v + _BN_EPS)
    t1 = bn1_b + (b1 - bn1_m) * s1            # fc1 bias folded into bn1 shift
    s2 = bn2_g / jnp.sqrt(bn2_v + _BN_EPS)
    t2 = bn2_b + (b2 - bn2_m) * s2            # fc2 bias folded into bn2 shift

    w1s = (w1 * s1[None, :]).astype(jnp.bfloat16)   # bn1 scale folded into fc1
    w2s = (w2 * s2[None, :]).astype(jnp.bfloat16)   # bn2 scale folded into fc2

    h2 = w2.shape[1]
    # Padding columns >= 18 MUST stay exactly zero (score = lane-sum relies on it).
    w3p = jnp.zeros((h2, _OUT_PAD), jnp.float32).at[:, :_NUM_ITEMS].set(w3)
    b3p = jnp.zeros((_OUT_PAD,), jnp.float32).at[:_NUM_ITEMS].set(b3)

    row = lambda v: v.reshape(1, -1).astype(jnp.float32)
    return dict(w1=w1s, t1=row(t1), w2=w2s, t2=row(t2),
                w3=w3p.astype(jnp.bfloat16), b3=row(b3p))


def regression_head_forward(x_nchw, prep):
    """x_nchw: (B, C, H, W) float32; prep: output of prepare_params.
    Returns (B, _NUM_ITEMS + 1) float32."""
    B = x_nchw.shape[0]
    x = x_nchw.reshape(B, -1)                 # x.view(B, -1); stays f32 (cast in-kernel)
    C = x.shape[1]
    H1 = prep["w1"].shape[1]                  # 8C
    H2 = prep["w2"].shape[1]                  # 4C

    budget, vmem_limit = _vmem_budget()
    bm, tk = _plan(B, C, H1, H2, budget)

    flops = 2 * B * (C * H1 + H1 * H2 + H2 * _OUT_PAD) + 4 * B * (H1 + H2)
    bytes_accessed = (x.size * 4
                      + (prep["w1"].size + prep["w2"].size + prep["w3"].size) * 2
                      + (prep["t1"].size + prep["t2"].size + prep["b3"].size) * 4
                      + B * _OUT_PAD * 4)
    cost = pl.CostEstimate(flops=int(flops), transcendentals=0,
                           bytes_accessed=int(bytes_accessed))

    if tk is None:
        # ---- Fast path: weights resident, single (batch) grid axis ----
        out = pl.pallas_call(
            _resident_kernel,
            out_shape=jax.ShapeDtypeStruct((B, _OUT_PAD), jnp.float32),
            grid_spec=pltpu.PrefetchScalarGridSpec(
                num_scalar_prefetch=0,
                grid=(B // bm,),
                in_specs=[
                    pl.BlockSpec((bm, C),        lambda i: (i, 0)),   # x (f32)
                    pl.BlockSpec((C, H1),        lambda i: (0, 0)),   # w1 resident
                    pl.BlockSpec((1, H1),        lambda i: (0, 0)),   # t1
                    pl.BlockSpec((H1, H2),       lambda i: (0, 0)),   # w2 resident
                    pl.BlockSpec((1, H2),        lambda i: (0, 0)),   # t2
                    pl.BlockSpec((H2, _OUT_PAD), lambda i: (0, 0)),   # w3 (padded)
                    pl.BlockSpec((1, _OUT_PAD),  lambda i: (0, 0)),   # b3 (padded)
                ],
                out_specs=pl.BlockSpec((bm, _OUT_PAD), lambda i: (i, 0)),
            ),
            compiler_params=pltpu.CompilerParams(
                dimension_semantics=("parallel",),
                vmem_limit_bytes=vmem_limit),
            cost_estimate=cost,
        )(x, prep["w1"], prep["t1"], prep["w2"], prep["t2"],
          prep["w3"], prep["b3"])
    else:
        # ---- Fallback: stream w1/w2 in k tiles over the 8C hidden dim ----
        out = pl.pallas_call(
            _streamed_kernel,
            out_shape=jax.ShapeDtypeStruct((B, _OUT_PAD), jnp.float32),
            grid_spec=pltpu.PrefetchScalarGridSpec(
                num_scalar_prefetch=0,
                grid=(B // bm, H1 // tk),
                in_specs=[
                    pl.BlockSpec((bm, C),        lambda i, k: (i, 0)),  # x resident over k
                    pl.BlockSpec((C, tk),        lambda i, k: (0, k)),  # w1 k-tile
                    pl.BlockSpec((1, tk),        lambda i, k: (0, k)),  # t1 k-tile
                    pl.BlockSpec((tk, H2),       lambda i, k: (k, 0)),  # w2 k-tile
                    pl.BlockSpec((1, H2),        lambda i, k: (0, 0)),  # t2
                    pl.BlockSpec((H2, _OUT_PAD), lambda i, k: (0, 0)),  # w3 (padded)
                    pl.BlockSpec((1, _OUT_PAD),  lambda i, k: (0, 0)),  # b3 (padded)
                ],
                out_specs=pl.BlockSpec((bm, _OUT_PAD), lambda i, k: (i, 0)),
                scratch_shapes=[pltpu.VMEM((bm, H2), jnp.float32)],
            ),
            compiler_params=pltpu.CompilerParams(
                dimension_semantics=("parallel", "arbitrary"),
                vmem_limit_bytes=vmem_limit),
            cost_estimate=cost,
        )(x, prep["w1"], prep["t1"], prep["w2"], prep["t2"],
          prep["w3"], prep["b3"])

    return out[:, : _NUM_ITEMS + 1]


# ----------------------------------------------------------------------------
# Synthetic params + pure-JAX reference + test
# ----------------------------------------------------------------------------

def make_params(key, in_channels):
    """Deterministic synthetic parameters matching RegressionHead.__init__."""
    c = in_channels
    keys = jax.random.split(key, 10)

    def lin(k, fan_in, fan_out):
        bound = 1.0 / jnp.sqrt(fan_in)
        kw, kb = jax.random.split(k)
        w = jax.random.uniform(kw, (fan_in, fan_out), jnp.float32, -bound, bound)
        b = jax.random.uniform(kb, (fan_out,), jnp.float32, -bound, bound)
        return w, b

    w1, b1 = lin(keys[0], c, c * 8)
    w2, b2 = lin(keys[1], c * 8, c * 4)
    w3, b3 = lin(keys[2], c * 4, _NUM_ITEMS)

    bn1_g = jnp.ones((c * 8,), jnp.float32)
    bn1_b = jnp.zeros((c * 8,), jnp.float32)
    bn1_m = 0.1 * jax.random.normal(keys[3], (c * 8,), jnp.float32)
    bn1_v = 1.0 + 0.05 * jax.random.uniform(keys[4], (c * 8,), jnp.float32)

    bn2_g = jnp.ones((c * 4,), jnp.float32)
    bn2_b = jnp.zeros((c * 4,), jnp.float32)
    bn2_m = 0.1 * jax.random.normal(keys[5], (c * 4,), jnp.float32)
    bn2_v = 1.0 + 0.05 * jax.random.uniform(keys[6], (c * 4,), jnp.float32)

    sw = jnp.ones((_NUM_ITEMS,), jnp.float32)   # score_layer.weight frozen to ones

    return (w1, b1, bn1_g, bn1_b, bn1_m, bn1_v,
            w2, b2, bn2_g, bn2_b, bn2_m, bn2_v,
            w3, b3, sw)


def _reference(x_nchw, params):
    """Pure f32 JAX reference with the original module semantics (eval mode)."""
    (w1, b1, bn1_g, bn1_b, bn1_m, bn1_v,
     w2, b2, bn2_g, bn2_b, bn2_m, bn2_v,
     w3, b3, sw) = params
    x = x_nchw.reshape(x_nchw.shape[0], -1)
    h = x @ w1 + b1
    h = (h - bn1_m) / jnp.sqrt(bn1_v + _BN_EPS) * bn1_g + bn1_b
    h = jnp.maximum(h, 0.0)
    h = h @ w2 + b2
    h = (h - bn2_m) / jnp.sqrt(bn2_v + _BN_EPS) * bn2_g + bn2_b
    h = jnp.maximum(h, 0.0)
    items = h @ w3 + b3
    score = items @ sw.reshape(-1, 1)
    return jnp.concatenate([items, score], axis=1)


if __name__ == "__main__":
    # conv features before flattening: in_channels = C*H*W = 8*2*2 = 32
    B, C, H, W = 4, 8, 2, 2
    key = jax.random.PRNGKey(0)
    kx, kp = jax.random.split(key)

    x = jax.random.normal(kx, (B, C, H, W), jnp.float32)
    params = make_params(kp, in_channels=C * H * W)
    prep = prepare_params(params)

    out = regression_head_forward(x, prep)
    out = jax.block_until_ready(out)

    ref = _reference(x, params)
    assert out.shape == (B, _NUM_ITEMS + 1), out.shape
    # Tolerance accounts for bf16 casts of the (BN-scale-folded) weights and
    # bf16 activations on the MXU path.
    assert jnp.allclose(out, ref, atol=5e-2, rtol=5e-2), "mismatch vs reference"

    print("KERNEL_OK")
</pallas_src>

<mosaic_0001>
module attributes {stable_mosaic.version = 11 : i64} {
  func.func @_resident_kernel(%arg0: i32, %arg1: memref<4x32xf32, #tpu.memory_space<vmem>>, %arg2: memref<32x256xbf16, #tpu.memory_space<vmem>>, %arg3: memref<1x256xf32, #tpu.memory_space<vmem>>, %arg4: memref<256x128xbf16, #tpu.memory_space<vmem>>, %arg5: memref<1x128xf32, #tpu.memory_space<vmem>>, %arg6: memref<128x128xbf16, #tpu.memory_space<vmem>>, %arg7: memref<1x128xf32, #tpu.memory_space<vmem>>, %arg8: memref<4x128xf32, #tpu.memory_space<vmem>>) attributes {dimension_semantics = [#tpu.dimension_semantics<parallel>], iteration_bounds = array<i64: 1>, scalar_prefetch = 0 : i64, scratch_operands = 0 : i64, tpu.core_type = #tpu.core_type<tc>, window_params = [{transform_indices = @transform_0, window_bounds = array<i64: 4, 32>}, {pipeline_mode = #tpu.pipeline_mode<synchronous>, transform_indices = @transform_1, window_bounds = array<i64: 32, 256>}, {pipeline_mode = #tpu.pipeline_mode<synchronous>, transform_indices = @transform_2, window_bounds = array<i64: 1, 256>}, {pipeline_mode = #tpu.pipeline_mode<synchronous>, transform_indices = @transform_3, window_bounds = array<i64: 256, 128>}, {pipeline_mode = #tpu.pipeline_mode<synchronous>, transform_indices = @transform_4, window_bounds = array<i64: 1, 128>}, {pipeline_mode = #tpu.pipeline_mode<synchronous>, transform_indices = @transform_5, window_bounds = array<i64: 128, 128>}, {pipeline_mode = #tpu.pipeline_mode<synchronous>, transform_indices = @transform_6, window_bounds = array<i64: 1, 128>}, {transform_indices = @transform_7, window_bounds = array<i64: 4, 128>}]} {
    %c0 = arith.constant 0 : index
    %c0_0 = arith.constant 0 : index
    %0 = vector.load %arg1[%c0, %c0_0] : memref<4x32xf32, #tpu.memory_space<vmem>>, vector<4x32xf32>
    %1 = arith.truncf %0 : vector<4x32xf32> to vector<4x32xbf16>
    %c0_1 = arith.constant 0 : index
    %c0_2 = arith.constant 0 : index
    %2 = vector.load %arg2[%c0_1, %c0_2] : memref<32x256xbf16, #tpu.memory_space<vmem>>, vector<32x256xbf16>
    %cst = arith.constant dense<0.000000e+00> : vector<4x256xf32>
    %3 = tpu.matmul %1, %2, %cst {dimension_numbers = #tpu.dot_dimension_numbers<[1], [0], [0], [1], [0, 0, 1, 1], [], []>} : vector<4x32xbf16>, vector<32x256xbf16>, vector<4x256xf32> -> vector<4x256xf32>
    %c0_3 = arith.constant 0 : index
    %c0_4 = arith.constant 0 : index
    %4 = vector.load %arg3[%c0_3, %c0_4] : memref<1x256xf32, #tpu.memory_space<vmem>>, vector<1x256xf32>
    %5 = vector.broadcast %4 : vector<1x256xf32> to vector<4x256xf32>
    %6 = arith.addf %3, %5 : vector<4x256xf32>
    %cst_5 = arith.constant 0.000000e+00 : f32
    %7 = vector.broadcast %cst_5 : f32 to vector<4x256xf32>
    %8 = arith.maximumf %6, %7 : vector<4x256xf32>
    %9 = arith.truncf %8 : vector<4x256xf32> to vector<4x256xbf16>
    %c0_6 = arith.constant 0 : index
    %c0_7 = arith.constant 0 : index
    %10 = vector.load %arg4[%c0_6, %c0_7] : memref<256x128xbf16, #tpu.memory_space<vmem>>, vector<256x128xbf16>
    %cst_8 = arith.constant dense<0.000000e+00> : vector<4x128xf32>
    %11 = tpu.matmul %9, %10, %cst_8 {dimension_numbers = #tpu.dot_dimension_numbers<[1], [0], [0], [1], [0, 0, 1, 1], [], []>} : vector<4x256xbf16>, vector<256x128xbf16>, vector<4x128xf32> -> vector<4x128xf32>
    %c0_9 = arith.constant 0 : index
    %c0_10 = arith.constant 0 : index
    %12 = vector.load %arg5[%c0_9, %c0_10] : memref<1x128xf32, #tpu.memory_space<vmem>>, vector<1x128xf32>
    %13 = vector.broadcast %12 : vector<1x128xf32> to vector<4x128xf32>
    %14 = arith.addf %11, %13 : vector<4x128xf32>
    %cst_11 = arith.constant 0.000000e+00 : f32
    %15 = vector.broadcast %cst_11 : f32 to vector<4x128xf32>
    %16 = arith.maximumf %14, %15 : vector<4x128xf32>
    %17 = arith.truncf %16 : vector<4x128xf32> to vector<4x128xbf16>
    %c0_12 = arith.constant 0 : index
    %c0_13 = arith.constant 0 : index
    %18 = vector.load %arg6[%c0_12, %c0_13] : memref<128x128xbf16, #tpu.memory_space<vmem>>, vector<128x128xbf16>
    %cst_14 = arith.constant dense<0.000000e+00> : vector<4x128xf32>
    %19 = tpu.matmul %17, %18, %cst_14 {dimension_numbers = #tpu.dot_dimension_numbers<[1], [0], [0], [1], [0, 0, 1, 1], [], []>} : vector<4x128xbf16>, vector<128x128xbf16>, vector<4x128xf32> -> vector<4x128xf32>
    %c0_15 = arith.constant 0 : index
    %c0_16 = arith.constant 0 : index
    %20 = vector.load %arg7[%c0_15, %c0_16] : memref<1x128xf32, #tpu.memory_space<vmem>>, vector<1x128xf32>
    %21 = vector.broadcast %20 : vector<1x128xf32> to vector<4x128xf32>
    %22 = arith.addf %19, %21 : vector<4x128xf32>
    %cst_17 = arith.constant dense<0.000000e+00> : vector<4xf32>
    %23 = vector.multi_reduction <add>, %22, %cst_17 [1] : vector<4x128xf32> to vector<4xf32>
    %24 = vector.shape_cast %23 : vector<4xf32> to vector<4x1xf32>
    %25 = tpu.iota {dimensions = array<i32: 1>} : vector<4x128xi32>
    %c18_i32 = arith.constant 18 : i32
    %26 = vector.broadcast %c18_i32 : i32 to vector<4x128xi32>
    %27 = arith.cmpi eq, %25, %26 : vector<4x128xi32>
    %28 = vector.shape_cast %24 : vector<4x1xf32> to vector<4x1xf32>
    %29 = vector.broadcast %28 : vector<4x1xf32> to vector<4x128xf32>
    %30 = arith.select %27, %29, %22 : vector<4x128xi1>, vector<4x128xf32>
    %c0_18 = arith.constant 0 : index
    %c0_19 = arith.constant 0 : index
    %31 = vector.load %arg8[%c0_18, %c0_19] : memref<4x128xf32, #tpu.memory_space<vmem>>, vector<4x128xf32>
    tpu.vector_store %arg8[%c0_18, %c0_19], %30 {strides = array<i32>} : memref<4x128xf32, #tpu.memory_space<vmem>>, vector<4x128xf32>,
    return
  }
  func.func @transform_0(%arg0: i32) -> (i32, i32) {
    %c0_i32 = arith.constant 0 : i32
    %c0_i32_0 = arith.constant 0 : i32
    return %arg0, %c0_i32 : i32, i32
  }
  func.func @transform_1(%arg0: i32) -> (i32, i32) {
    %c0_i32 = arith.constant 0 : i32
    %c0_i32_0 = arith.constant 0 : i32
    %c0_i32_1 = arith.constant 0 : i32
    return %c0_i32, %c0_i32_0 : i32, i32
  }
  func.func @transform_2(%arg0: i32) -> (i32, i32) {
    %c0_i32 = arith.constant 0 : i32
    %c0_i32_0 = arith.constant 0 : i32
    %c0_i32_1 = arith.constant 0 : i32
    return %c0_i32, %c0_i32_0 : i32, i32
  }
  func.func @transform_3(%arg0: i32) -> (i32, i32) {
    %c0_i32 = arith.constant 0 : i32
    %c0_i32_0 = arith.constant 0 : i32
    %c0_i32_1 = arith.constant 0 : i32
    return %c0_i32, %c0_i32_0 : i32, i32
  }
  func.func @transform_4(%arg0: i32) -> (i32, i32) {
    %c0_i32 = arith.constant 0 : i32
    %c0_i32_0 = arith.constant 0 : i32
    %c0_i32_1 = arith.constant 0 : i32
    return %c0_i32, %c0_i32_0 : i32, i32
  }
  func.func @transform_5(%arg0: i32) -> (i32, i32) {
    %c0_i32 = arith.constant 0 : i32
    %c0_i32_0 = arith.constant 0 : i32
    %c0_i32_1 = arith.constant 0 : i32
    return %c0_i32, %c0_i32_0 : i32, i32
  }
  func.func @transform_6(%arg0: i32) -> (i32, i32) {
    %c0_i32 = arith.constant 0 : i32
    %c0_i32_0 = arith.constant 0 : i32
    %c0_i32_1 = arith.constant 0 : i32
    return %c0_i32, %c0_i32_0 : i32, i32
  }
  func.func @transform_7(%arg0: i32) -> (i32, i32) {
    %c0_i32 = arith.constant 0 : i32
    %c0_i32_0 = arith.constant 0 : i32
    return %arg0, %c0_i32 : i32, i32
  }
}

</mosaic_0001>

<llo_original>
// kernel: tpu_custom_call.1
$region0: #{tpu_custom_call.1}
  #allocation0 [shape = 'u32[]', space=smem, size = 0x4, offset = 0x4, fixed_abs, tag = 'smem constant byte address 0x4 - core index']
  #allocation1 [shape = 'u32[144,128]{1,0:T(1,128)}', space=vmem, size = 0x12000, scoped, tag = 'internal scratch']
  %s0 = inlined_call_operand.hbm [shape: f32[4,32], index: 0, kind: input, shape index: {}]
  %s1 = inlined_call_operand.hbm [shape: bf16[32,256], index: 1, kind: input, shape index: {}]
  %s2 = inlined_call_operand.vmem [shape: f32[1,256], index: 2, kind: input, shape index: {}]
  %s3 = inlined_call_operand.hbm [shape: bf16[256,128], index: 3, kind: input, shape index: {}]
  %s4 = inlined_call_operand.vmem [shape: f32[1,128], index: 4, kind: input, shape index: {}]
  %s5 = inlined_call_operand.hbm [shape: bf16[128,128], index: 5, kind: input, shape index: {}]
  %s6 = inlined_call_operand.vmem [shape: f32[1,128], index: 6, kind: input, shape index: {}]
  %s7 = inlined_call_operand.hbm [shape: f32[4,128], index: 7, kind: output, shape index: {}]
  %s8 = sld [smem:[#allocation0]]
  $region54: #{tpu_custom_call.1} parent=0
    _
  %s10 = ssub.s32 1, %s8
  %s11 = scalar_select 0, %s10, %s8
  $region1: #{tpu_custom_call.1} parent=0
    #allocation2 [shape = 'u8[2048]{0}', space=vmem, size = 0x800, scoped, tag = 'input window, operand 0, single buffered']
    #allocation3 [shape = 's32[1]{0}', space=sflag, size = 0x4, scoped, tag = 'scoped memory for tpu_custom_call.1']
    #allocation4 [shape = 's32[1]{0}', space=sflag, size = 0x4, scoped, tag = 'scoped memory for tpu_custom_call.1']
    #allocation5 [shape = 'u8[16384]{0}', space=vmem, size = 0x4000, scoped, tag = 'input window, operand 1, single buffered']
    #allocation6 [shape = 's32[1]{0}', space=sflag, size = 0x4, scoped, tag = 'scoped memory for tpu_custom_call.1']
    #allocation7 [shape = 'u8[65536]{0}', space=vmem, size = 0x10000, scoped, tag = 'input window, operand 3, single buffered']
    #allocation8 [shape = 'u8[32768]{0}', space=vmem, size = 0x8000, scoped, tag = 'input window, operand 5, single buffered']
    #allocation9 [shape = 's32[1]{0}', space=sflag, size = 0x4, scoped, tag = 'scoped memory for tpu_custom_call.1']
    #allocation10 [shape = 'u8[2048]{0}', space=vmem, size = 0x800, scoped, tag = 'output window, operand 0, single buffered']
    %12 = vsyncpa [#allocation3], 0
    %13 = vsyncpa [#allocation6], 0
    %14 = vsyncpa [#allocation9], 0
    %15 = vsyncpa [#allocation4], 0
    // Predicated region
    $region2: #{tpu_custom_call.1} parent=1 // pred_check
      _
    $region3: #{tpu_custom_call.1} parent=1 // pred_check_branch
      %17 = sbr.rel (0) target = $region5
    $region4: #{tpu_custom_call.1} parent=1 // pred_region
      %s19 = ssub.s32 64, 64
      %20 = vsyncadd [#allocation3], %s19
      %s22 = sshll.u32 [#allocation2], 4
      %s23 = int_to_ptr.vmem [resolvable:$true] %s22
      %25 = dma.hbm_to_vmem [thread:$0]  %s0, 64, %s23, [#allocation3]
    $region5: #{tpu_custom_call.1} parent=1 // pred_fallthru
      _
    // Predicated region
    $region6: #{tpu_custom_call.1} parent=1 // pred_check
      _
    $region7: #{tpu_custom_call.1} parent=1 // pred_check_branch
      %27 = sbr.rel (0) target = $region9
    $region8: #{tpu_custom_call.1} parent=1 // pred_region
      %s29 = ssub.s32 512, 512
      %30 = vsyncadd [#allocation6], %s29
      %s31 = sshll.u32 [#allocation5], 4
      %s32 = int_to_ptr.vmem [resolvable:$true] %s31
      %37 = dma.hbm_to_vmem [thread:$0]  %s1, 512, %s32, [#allocation6], 128, 128, 8
    $region9: #{tpu_custom_call.1} parent=1 // pred_fallthru
      _
    // Predicated region
    $region10: #{tpu_custom_call.1} parent=1 // pred_check
      _
    $region11: #{tpu_custom_call.1} parent=1 // pred_check_branch
      %39 = sbr.rel (0) target = $region13
    $region12: #{tpu_custom_call.1} parent=1 // pred_region
      _
    $region13: #{tpu_custom_call.1} parent=1 // pred_fallthru
      _
    // Predicated region
    $region14: #{tpu_custom_call.1} parent=1 // pred_check
      _
    $region15: #{tpu_custom_call.1} parent=1 // pred_check_branch
      %41 = sbr.rel (0) target = $region17
    $region16: #{tpu_custom_call.1} parent=1 // pred_region
      %s43 = ssub.s32 2048, 2048
      %44 = vsyncadd [#allocation6], %s43
      %s45 = sshll.u32 [#allocation7], 4
      %s46 = int_to_ptr.vmem [resolvable:$true] %s45
      %51 = dma.hbm_to_vmem [thread:$0]  %s3, 2048, %s46, [#allocation6], 64, 64, 4
    $region17: #{tpu_custom_call.1} parent=1 // pred_fallthru
      _
    // Predicated region
    $region18: #{tpu_custom_call.1} parent=1 // pred_check
      _
    $region19: #{tpu_custom_call.1} parent=1 // pred_check_branch
      %53 = sbr.rel (0) target = $region21
    $region20: #{tpu_custom_call.1} parent=1 // pred_region
      _
    $region21: #{tpu_custom_call.1} parent=1 // pred_fallthru
      _
    // Predicated region
    $region22: #{tpu_custom_call.1} parent=1 // pred_check
      _
    $region23: #{tpu_custom_call.1} parent=1 // pred_check_branch
      %55 = sbr.rel (0) target = $region25
    $region24: #{tpu_custom_call.1} parent=1 // pred_region
      %s57 = ssub.s32 1024, 1024
      %58 = vsyncadd [#allocation9], %s57
      %s59 = sshll.u32 [#allocation8], 4
      %s60 = int_to_ptr.vmem [resolvable:$true] %s59
      %65 = dma.hbm_to_vmem [thread:$0]  %s5, 1024, %s60, [#allocation9], 64, 64, 4
    $region25: #{tpu_custom_call.1} parent=1 // pred_fallthru
      _
    // Predicated region
    $region26: #{tpu_custom_call.1} parent=1 // pred_check
      _
    $region27: #{tpu_custom_call.1} parent=1 // pred_check_branch
      %67 = sbr.rel (0) target = $region29
    $region28: #{tpu_custom_call.1} parent=1 // pred_region
      _
    $region29: #{tpu_custom_call.1} parent=1 // pred_fallthru
      _
    // Predicated region
    $region30: #{tpu_custom_call.1} parent=1 // pred_check
      _
    $region31: #{tpu_custom_call.1} parent=1 // pred_check_branch
      %69 = sbr.rel (0) target = $region33
    $region32: #{tpu_custom_call.1} parent=1 // pred_region
      %70 = dma.done [#allocation3], 64
    $region33: #{tpu_custom_call.1} parent=1 // pred_fallthru
      _
    // Predicated region
    $region34: #{tpu_custom_call.1} parent=1 // pred_check
      _
    $region35: #{tpu_custom_call.1} parent=1 // pred_check_branch
      %72 = sbr.rel (0) target = $region37
    $region36: #{tpu_custom_call.1} parent=1 // pred_region
      %73 = dma.done [#allocation6], 512
    $region37: #{tpu_custom_call.1} parent=1 // pred_fallthru
      _
    // Predicated region
    $region38: #{tpu_custom_call.1} parent=1 // pred_check
      _
    $region39: #{tpu_custom_call.1} parent=1 // pred_check_branch
      %75 = sbr.rel (0) target = $region41
    $region40: #{tpu_custom_call.1} parent=1 // pred_region
      %76 = dma.done [#allocation6], 2048
    $region41: #{tpu_custom_call.1} parent=1 // pred_fallthru
      _
    // Predicated region
    $region42: #{tpu_custom_call.1} parent=1 // pred_check
      _
    $region43: #{tpu_custom_call.1} parent=1 // pred_check_branch
      %78 = sbr.rel (0) target = $region45
    $region44: #{tpu_custom_call.1} parent=1 // pred_region
      %79 = dma.done [#allocation9], 1024
    $region45: #{tpu_custom_call.1} parent=1 // pred_fallthru
      _
    %v81 = vld [vmem:[#allocation2] sm:$0xf]
    %v82 = vpack.c.bf16 %v81, %v81
    %v83 = vld [vmem:[#allocation5] sm:$0xff]
    %v84 = vld [vmem:[#allocation5 + $0x8] sm:$0xff]
    %v85 = vld [vmem:[#allocation5 + $0x10] sm:$0xff]
    %v86 = vld [vmem:[#allocation5 + $0x18] sm:$0xff]
    %v87 = vld [vmem:[%s2] sm:$0x3]
    %v89 = vlaneseq
    %v90 = vshrl.u32 %v89, 7
    %v91 = vsub.s32 0, %v90
    %v92 = vrot.slane %v87, %v91
    %v93 = vlaneseq
    %v94 = vshrl.u32 %v93, 7
    %v95 = vsub.s32 1, %v94
    %v96 = vrot.slane %v87, %v95
    %v103 = vunpack.c.l.b16 %v83
    %v104 = vunpack.c.h.b16 %v83
    %v105 = vunpack.c.l.b16 %v84
    %v106 = vunpack.c.h.b16 %v84
    %v107 = vunpack.c.l.b16 %v85
    %v108 = vunpack.c.h.b16 %v85
    %v109 = vunpack.c.l.b16 %v86
    %v110 = vunpack.c.h.b16 %v86
    %v111 = vpack.c.b16 %v105, %v103
    %v112 = vpack.c.b16 %v106, %v104
    %v113 = vpack.c.b16 %v109, %v107
    %v114 = vpack.c.b16 %v110, %v108
    %vm119 = vcmask 261120
    %v121 = vsel %vm119, %v82, 0
    %123 = vmatprep.subr.bf16.mxu0 0
    %124 = vmatpush1.bf16.msra.mxu0 0
    %125 = vmatprep.subr.bf16.mxu0 0
    %126 = vmatpush1.bf16.msra.mxu0 0
    %127 = vmatprep.subr.bf16.mxu0 0
    %128 = vmatpush1.bf16.msra.mxu0 0
    %129 = vmatprep.subr.bf16.mxu0 0
    %130 = vmatpush1.bf16.msra.mxu0 0
    %131 = vmatprep.subr.bf16.mxu0 0
    %132 = vmatpush1.bf16.msra.mxu0 0
    %133 = vmatprep.subr.bf16.mxu0 0
    %134 = vmatpush1.bf16.msra.mxu0 0
    %135 = vmatprep.subr.bf16.mxu0 %v114
    %136 = vmatpush1.bf16.msra.mxu0 %v113
    %137 = vmatprep.subr.bf16.mxu0 %v112
    %138 = vmatpush1.bf16.msra.mxu0 %v111
    %139 = vmatprep.subr.bf16.mxu0 0
    %140 = vmatpush2.bf16.msra.mxu0 0
    %141 = vmatprep.subr.bf16.mxu0 0
    %142 = vmatpush2.bf16.msra.mxu0 0
    %143 = vmatprep.subr.bf16.mxu0 0
    %144 = vmatpush2.bf16.msra.mxu0 0
    %145 = vmatprep.subr.bf16.mxu0 0
    %146 = vmatpush2.bf16.msra.mxu0 0
    %147 = vmatprep.subr.bf16.mxu0 0
    %148 = vmatpush2.bf16.msra.mxu0 0
    %149 = vmatprep.subr.bf16.mxu0 0
    %150 = vmatpush2.bf16.msra.mxu0 0
    %151 = vmatprep.subr.bf16.mxu0 0
    %152 = vmatpush2.bf16.msra.mxu0 0
    %153 = vmatprep.subr.bf16.mxu0 0
    %154 = vmatpush2.bf16.msra.mxu0 0
    %155 = vmatprep.mubr.bf16.mxu0 0
    %156 = vmatmul.mubr.bf16.gmra.mxu0 %v121
    %v157 = vpop.f32.mrf.mxu0
    %v158 = vadd.f32 %v92, %v157
    %v159 = vpop.f32.mrf.mxu0
    %v160 = vadd.f32 %v96, %v159
    %v161 = vpop.f32.mrf.mxu0
    %v162 = vpop.f32.mrf.mxu0
    %163 = vdwg.mxu0
    %v164 = vmax.f32 %v158, 0.0
    %v165 = vmax.f32 %v160, 0.0
    %v166 = vpack.c.bf16 %v164, %v164
    %v167 = vpack.c.bf16 %v165, %v165
    %v168 = vld [vmem:[#allocation7] sm:$0xf]
    %v169 = vld [vmem:[#allocation7 + $0x4] sm:$0xf]
    %v170 = vld [vmem:[#allocation7 + $0x8] sm:$0xf]
    %v171 = vld [vmem:[#allocation7 + $0xc] sm:$0xf]
    %v172 = vld [vmem:[#allocation7 + $0x10] sm:$0xf]
    %v173 = vld [vmem:[#allocation7 + $0x14] sm:$0xf]
    %v174 = vld [vmem:[#allocation7 + $0x18] sm:$0xf]
    %v175 = vld [vmem:[#allocation7 + $0x1c] sm:$0xf]
    %v176 = vld [vmem:[#allocation7 + $0x20] sm:$0xf]
    %v177 = vld [vmem:[#allocation7 + $0x24] sm:$0xf]
    %v178 = vld [vmem:[#allocation7 + $0x28] sm:$0xf]
    %v179 = vld [vmem:[#allocation7 + $0x2c] sm:$0xf]
    %v180 = vld [vmem:[#allocation7 + $0x30] sm:$0xf]
    %v181 = vld [vmem:[#allocation7 + $0x34] sm:$0xf]
    %v182 = vld [vmem:[#allocation7 + $0x38] sm:$0xf]
    %v183 = vld [vmem:[#allocation7 + $0x3c] sm:$0xf]
    %v184 = vld [vmem:[#allocation7 + $0x40] sm:$0xf]
    %v185 = vld [vmem:[#allocation7 + $0x44] sm:$0xf]
    %v186 = vld [vmem:[#allocation7 + $0x48] sm:$0xf]
    %v187 = vld [vmem:[#allocation7 + $0x4c] sm:$0xf]
    %v188 = vld [vmem:[#allocation7 + $0x50] sm:$0xf]
    %v189 = vld [vmem:[#allocation7 + $0x54] sm:$0xf]
    %v190 = vld [vmem:[#allocation7 + $0x58] sm:$0xf]
    %v191 = vld [vmem:[#allocation7 + $0x5c] sm:$0xf]
    %v192 = vld [vmem:[#allocation7 + $0x60] sm:$0xf]
    %v193 = vld [vmem:[#allocation7 + $0x64] sm:$0xf]
    %v194 = vld [vmem:[#allocation7 + $0x68] sm:$0xf]
    %v195 = vld [vmem:[#allocation7 + $0x6c] sm:$0xf]
    %v196 = vld [vmem:[#allocation7 + $0x70] sm:$0xf]
    %v197 = vld [vmem:[#allocation7 + $0x74] sm:$0xf]
    %v198 = vld [vmem:[#allocation7 + $0x78] sm:$0xf]
    %v199 = vld [vmem:[#allocation7 + $0x7c] sm:$0xf]
    %v200 = vld [vmem:[%s4] sm:$0x1]
    %v202 = vlaneseq
    %v203 = vshrl.u32 %v202, 7
    %v204 = vsub.s32 0, %v203
    %v205 = vrot.slane %v200, %v204
    %v239 = vunpack.c.l.b16 %v168
    %v240 = vunpack.c.l.b16 %v169
    %v241 = vunpack.c.l.b16 %v170
    %v242 = vunpack.c.l.b16 %v171
    %v243 = vunpack.c.l.b16 %v172
    %v244 = vunpack.c.l.b16 %v173
    %v245 = vunpack.c.l.b16 %v174
    %v246 = vunpack.c.l.b16 %v175
    %v247 = vunpack.c.l.b16 %v176
    %v248 = vunpack.c.l.b16 %v177
    %v249 = vunpack.c.l.b16 %v178
    %v250 = vunpack.c.l.b16 %v179
    %v251 = vunpack.c.l.b16 %v180
    %v252 = vunpack.c.l.b16 %v181
    %v253 = vunpack.c.l.b16 %v182
    %v254 = vunpack.c.l.b16 %v183
    %v255 = vunpack.c.l.b16 %v184
    %v256 = vunpack.c.l.b16 %v185
    %v257 = vunpack.c.l.b16 %v186
    %v258 = vunpack.c.l.b16 %v187
    %v259 = vunpack.c.l.b16 %v188
    %v260 = vunpack.c.l.b16 %v189
    %v261 = vunpack.c.l.b16 %v190
    %v262 = vunpack.c.l.b16 %v191
    %v263 = vunpack.c.l.b16 %v192
    %v264 = vunpack.c.l.b16 %v193
    %v265 = vunpack.c.l.b16 %v194
    %v266 = vunpack.c.l.b16 %v195
    %v267 = vunpack.c.l.b16 %v196
    %v268 = vunpack.c.l.b16 %v197
    %v269 = vunpack.c.l.b16 %v198
    %v270 = vunpack.c.l.b16 %v199
    %v271 = vpack.c.b16 %v240, %v239
    %v272 = vpack.c.b16 %v242, %v241
    %v273 = vpack.c.b16 %v244, %v243
    %v274 = vpack.c.b16 %v246, %v245
    %v275 = vpack.c.b16 %v248, %v247
    %v276 = vpack.c.b16 %v250, %v249
    %v277 = vpack.c.b16 %v252, %v251
    %v278 = vpack.c.b16 %v254, %v253
    %v279 = vpack.c.b16 %v256, %v255
    %v280 = vpack.c.b16 %v258, %v257
    %v281 = vpack.c.b16 %v260, %v259
    %v282 = vpack.c.b16 %v262, %v261
    %v283 = vpack.c.b16 %v264, %v263
    %v284 = vpack.c.b16 %v266, %v265
    %v285 = vpack.c.b16 %v268, %v267
    %v286 = vpack.c.b16 %v270, %v269
    %303 = vmatprep.subr.bf16.mxu0 0
    %304 = vmatpush1.bf16.msra.mxu0 %v278
    %305 = vmatprep.subr.bf16.mxu0 0
    %306 = vmatpush1.bf16.msra.mxu0 %v277
    %307 = vmatprep.subr.bf16.mxu0 0
    %308 = vmatpush1.bf16.msra.mxu0 %v276
    %309 = vmatprep.subr.bf16.mxu0 0
    %310 = vmatpush1.bf16.msra.mxu0 %v275
    %311 = vmatprep.subr.bf16.mxu0 0
    %312 = vmatpush1.bf16.msra.mxu0 %v274
    %313 = vmatprep.subr.bf16.mxu0 0
    %314 = vmatpush1.bf16.msra.mxu0 %v273
    %315 = vmatprep.subr.bf16.mxu0 0
    %316 = vmatpush1.bf16.msra.mxu0 %v272
    %317 = vmatprep.subr.bf16.mxu0 0
    %318 = vmatpush1.bf16.msra.mxu0 %v271
    %319 = vmatprep.subr.bf16.mxu0 0
    %320 = vmatpush2.bf16.msra.mxu0 %v286
    %321 = vmatprep.subr.bf16.mxu0 0
    %322 = vmatpush2.bf16.msra.mxu0 %v285
    %323 = vmatprep.subr.bf16.mxu0 0
    %324 = vmatpush2.bf16.msra.mxu0 %v284
    %325 = vmatprep.subr.bf16.mxu0 0
    %326 = vmatpush2.bf16.msra.mxu0 %v283
    %327 = vmatprep.subr.bf16.mxu0 0
    %328 = vmatpush2.bf16.msra.mxu0 %v282
    %329 = vmatprep.subr.bf16.mxu0 0
    %330 = vmatpush2.bf16.msra.mxu0 %v281
    %331 = vmatprep.subr.bf16.mxu0 0
    %332 = vmatpush2.bf16.msra.mxu0 %v280
    %333 = vmatprep.subr.bf16.mxu0 0
    %334 = vmatpush2.bf16.msra.mxu0 %v279
    %335 = vmatprep.mubr.bf16.mxu0 %v167
    %336 = vmatmul.mubr.bf16.gmra.mxu0 %v166
    %v337 = vpop.f32.mrf.mxu0
    %v338 = vadd.f32 %v205, %v337
    %v339 = vpop.f32.mrf.mxu0
    %v340 = vpop.f32.mrf.mxu0
    %v341 = vpop.f32.mrf.mxu0
    %342 = vdwg.mxu0
    %v343 = vmax.f32 %v338, 0.0
    %v344 = vpack.c.bf16 %v343, %v343
    %v345 = vld [vmem:[#allocation8] sm:$0xf]
    %v346 = vld [vmem:[#allocation8 + $0x4] sm:$0xf]
    %v347 = vld [vmem:[#allocation8 + $0x8] sm:$0xf]
    %v348 = vld [vmem:[#allocation8 + $0xc] sm:$0xf]
    %v349 = vld [vmem:[#allocation8 + $0x10] sm:$0xf]
    %v350 = vld [vmem:[#allocation8 + $0x14] sm:$0xf]
    %v351 = vld [vmem:[#allocation8 + $0x18] sm:$0xf]
    %v352 = vld [vmem:[#allocation8 + $0x1c] sm:$0xf]
    %v353 = vld [vmem:[#allocation8 + $0x20] sm:$0xf]
    %v354 = vld [vmem:[#allocation8 + $0x24] sm:$0xf]
    %v355 = vld [vmem:[#allocation8 + $0x28] sm:$0xf]
    %v356 = vld [vmem:[#allocation8 + $0x2c] sm:$0xf]
    %v357 = vld [vmem:[#allocation8 + $0x30] sm:$0xf]
    %v358 = vld [vmem:[#allocation8 + $0x34] sm:$0xf]
    %v359 = vld [vmem:[#allocation8 + $0x38] sm:$0xf]
    %v360 = vld [vmem:[#allocation8 + $0x3c] sm:$0xf]
    %v361 = vld [vmem:[%s6] sm:$0x1]
    %v363 = vlaneseq
    %v364 = vshrl.u32 %v363, 7
    %v365 = vsub.s32 0, %v364
    %v366 = vrot.slane %v361, %v365
    %v384 = vunpack.c.l.b16 %v345
    %v385 = vunpack.c.l.b16 %v346
    %v386 = vunpack.c.l.b16 %v347
    %v387 = vunpack.c.l.b16 %v348
    %v388 = vunpack.c.l.b16 %v349
    %v389 = vunpack.c.l.b16 %v350
    %v390 = vunpack.c.l.b16 %v351
    %v391 = vunpack.c.l.b16 %v352
    %v392 = vunpack.c.l.b16 %v353
    %v393 = vunpack.c.l.b16 %v354
    %v394 = vunpack.c.l.b16 %v355
    %v395 = vunpack.c.l.b16 %v356
    %v396 = vunpack.c.l.b16 %v357
    %v397 = vunpack.c.l.b16 %v358
    %v398 = vunpack.c.l.b16 %v359
    %v399 = vunpack.c.l.b16 %v360
    %v400 = vpack.c.b16 %v385, %v384
    %v401 = vpack.c.b16 %v387, %v386
    %v402 = vpack.c.b16 %v389, %v388
    %v403 = vpack.c.b16 %v391, %v390
    %v404 = vpack.c.b16 %v393, %v392
    %v405 = vpack.c.b16 %v395, %v394
    %v406 = vpack.c.b16 %v397, %v396
    %v407 = vpack.c.b16 %v399, %v398
    %416 = vmatprep.subr.bf16.mxu0 0
    %417 = vmatpush1.bf16.msra.mxu0 %v407
    %418 = vmatprep.subr.bf16.mxu0 0
    %419 = vmatpush1.bf16.msra.mxu0 %v406
    %420 = vmatprep.subr.bf16.mxu0 0
    %421 = vmatpush1.bf16.msra.mxu0 %v405
    %422 = vmatprep.subr.bf16.mxu0 0
    %423 = vmatpush1.bf16.msra.mxu0 %v404
    %424 = vmatprep.subr.bf16.mxu0 0
    %425 = vmatpush1.bf16.msra.mxu0 %v403
    %426 = vmatprep.subr.bf16.mxu0 0
    %427 = vmatpush1.bf16.msra.mxu0 %v402
    %428 = vmatprep.subr.bf16.mxu0 0
    %429 = vmatpush1.bf16.msra.mxu0 %v401
    %430 = vmatprep.subr.bf16.mxu0 0
    %431 = vmatpush1.bf16.msra.mxu0 %v400
    %432 = vmatprep.subr.bf16.mxu0 0
    %433 = vmatpush2.bf16.msra.mxu0 0
    %434 = vmatprep.subr.bf16.mxu0 0
    %435 = vmatpush2.bf16.msra.mxu0 0
    %436 = vmatprep.subr.bf16.mxu0 0
    %437 = vmatpush2.bf16.msra.mxu0 0
    %438 = vmatprep.subr.bf16.mxu0 0
    %439 = vmatpush2.bf16.msra.mxu0 0
    %440 = vmatprep.subr.bf16.mxu0 0
    %441 = vmatpush2.bf16.msra.mxu0 0
    %442 = vmatprep.subr.bf16.mxu0 0
    %443 = vmatpush2.bf16.msra.mxu0 0
    %444 = vmatprep.subr.bf16.mxu0 0
    %445 = vmatpush2.bf16.msra.mxu0 0
    %446 = vmatprep.subr.bf16.mxu0 0
    %447 = vmatpush2.bf16.msra.mxu0 0
    %448 = vmatprep.mubr.bf16.mxu0 0
    %449 = vmatmul.mubr.bf16.gmra.mxu0 %v344
    %v450 = vpop.f32.mrf.mxu0
    %v451 = vadd.f32 %v366, %v450
    %v452 = vpop.f32.mrf.mxu0
    %v453 = vpop.f32.mrf.mxu0
    %v454 = vpop.f32.mrf.mxu0
    %455 = vdwg.mxu0
    %vm456 = vcmask 1043456
    %v457 = vsel %vm456, %v451, 0.0
    %458 = vadd.xlane.f32.xlu0 %v457
    %v459 = vpop.xlane.xlu0 %458
    %v460 = vlaneseq
    %v461 = vand.u32 %v460, 127
    %vm462 = vcmp.eq.s32.totalorder %v461, 18
    %v463 = vsel %vm462, %v459, %v451
    %464 = vst [vmem:[#allocation10] sm:$0xf] %v463
    // Predicated region
    $region46: #{tpu_custom_call.1} parent=1 // pred_check
      _
    $region47: #{tpu_custom_call.1} parent=1 // pred_check_branch
      %466 = sbr.rel (0) target = $region49
    $region48: #{tpu_custom_call.1} parent=1 // pred_region
      %s468 = ssub.s32 64, 64
      %469 = vsyncadd [#allocation4], %s468
      %s471 = sshll.u32 [#allocation10], 4
      %s472 = int_to_ptr.vmem [resolvable:$true] %s471
      %474 = dma.vmem_to_hbm [thread:$0]  %s472, 64, %s7, [#allocation4]
    $region49: #{tpu_custom_call.1} parent=1 // pred_fallthru
      _
    // Predicated region
    $region50: #{tpu_custom_call.1} parent=1 // pred_check
      _
    $region51: #{tpu_custom_call.1} parent=1 // pred_check_branch
      %476 = sbr.rel (0) target = $region53
    $region52: #{tpu_custom_call.1} parent=1 // pred_region
      %477 = dma.done [#allocation4], 64
    $region53: #{tpu_custom_call.1} parent=1 // pred_fallthru
      _
    %478 = vsyncpa [#allocation3], 1
    %479 = vsyncpa [#allocation6], 1
    %480 = vsyncpa [#allocation9], 1
    %481 = vsyncpa [#allocation4], 1

</llo_original>
